<compile_context>
chip_gen: v7x
topology: tpu7x:2x2x1
jax: 0.10.0
libtpu: 0.0.40
codegen_flags: <defaults>
</compile_context>

<pallas_src>
import functools
import math

import jax
import jax.numpy as jnp
from jax.experimental import pallas as pl
from jax.experimental.pallas import tpu as pltpu

EPS = 1e-5
# which region feeds each AU class linear: 0=up, 1=mid, 2=down1, 3=down2
CLASS_REGION_IDX = (0, 0, 0, 1, 0, 3, 2, 2, 2, 3, 3, 3)
SUB_CLASS = (16, 2, 8, 16)
REGION_NAMES = ('up', 'mid', 'down1', 'down2')


# ----------------------------- fused Pallas kernel -----------------------------

def _fused_kernel(x_ref, wreg_ref, preg_ref, wcls_ref, pcls_ref,
                  whead_ref, bhead_ref, s_ref,
                  preds_ref, fv_ref, *, eps):
    """Entire LocalRelationshipModeling forward in one grid step.

    Lane-packed layout: region layer r occupies lanes [r*C, (r+1)*C) of the
    region pass; class layer j occupies lanes [j*C, (j+1)*C) of the class pass.

    x_ref:     (M, 4C)   region-packed inputs (M = BT * 21)
    wreg_ref:  (4C, 4C)  block-diagonal region fc weights
    preg_ref:  (3, 4C)   packed [bias; gamma; beta] for region blocks
    wcls_ref:  (4C, 12C) block-structured class fc weights (block (r_j, j))
    pcls_ref:  (3, 12C)  packed [bias; gamma; beta] for class blocks
    whead_ref: (4C, 42)  packed region-head weights (block rows per region)
    bhead_ref: (1, 42)   packed region-head biases
    s_ref:     (BT, M)   per-batch sequence-averaging matrix (1/N entries)
    preds_ref: (BT, 42)  [up(16) | mid(2) | down1(8) | down2(16)] predictions
    fv_ref:    (BT, 12C) flattened f_v
    """
    x = x_ref[...]                                           # (M, 4C)
    s = s_ref[...]                                           # (BT, M)

    # ---- 4 region LinearBlocks (fc + BN(train, biased var) + ReLU) ----
    h = jnp.dot(x, wreg_ref[...],
                preferred_element_type=jnp.float32) + preg_ref[0:1, :]
    mu = jnp.mean(h, axis=0, keepdims=True)                  # per-lane stats
    var = jnp.mean((h - mu) ** 2, axis=0, keepdims=True)
    y = jnp.maximum((h - mu) * jax.lax.rsqrt(var + eps) * preg_ref[1:2, :]
                    + preg_ref[2:3, :], 0.0)                 # (M, 4C)

    # ---- per-batch sequence mean of region outputs ----
    region_m = jnp.dot(s, y, preferred_element_type=jnp.float32)   # (BT, 4C)

    # ---- all 4 region heads in one matmul ----
    preds_ref[...] = (jnp.dot(region_m, whead_ref[...],
                              preferred_element_type=jnp.float32)
                      + bhead_ref[...]).astype(preds_ref.dtype)

    # ---- 12 class LinearBlocks; the block-structured weight routes each
    #      class to its source region's lanes directly (no gather, no dead y) ----
    hc = jnp.dot(y, wcls_ref[...],
                 preferred_element_type=jnp.float32) + pcls_ref[0:1, :]
    muc = jnp.mean(hc, axis=0, keepdims=True)
    varc = jnp.mean((hc - muc) ** 2, axis=0, keepdims=True)
    yc = jnp.maximum((hc - muc) * jax.lax.rsqrt(varc + eps) * pcls_ref[1:2, :]
                     + pcls_ref[2:3, :], 0.0)                # (M, 12C)

    # ---- per-batch sequence mean -> flattened f_v (lane-dense, 12C = 384) ----
    fv_ref[...] = jnp.dot(s, yc,
                          preferred_element_type=jnp.float32).astype(fv_ref.dtype)


# ----------------------------- parameter packing -----------------------------

def pack_params(params, C):
    """Pack per-layer parameters into lane-packed / block-structured matrices.

    Done once, outside the forward (weights are static per model)."""
    nreg, ncls = 4, len(CLASS_REGION_IDX)
    ktot = sum(SUB_CLASS)

    wreg = jnp.zeros((nreg * C, nreg * C), jnp.float32)
    for r in range(nreg):
        wreg = wreg.at[r * C:(r + 1) * C, r * C:(r + 1) * C].set(
            params['region_w'][r])
    preg = jnp.stack([params['region_b'].reshape(nreg * C),
                      params['region_g'].reshape(nreg * C),
                      params['region_beta'].reshape(nreg * C)], axis=0)

    wcls = jnp.zeros((nreg * C, ncls * C), jnp.float32)
    for j, r in enumerate(CLASS_REGION_IDX):
        wcls = wcls.at[r * C:(r + 1) * C, j * C:(j + 1) * C].set(
            params['class_w'][j])
    pcls = jnp.stack([params['class_b'].reshape(ncls * C),
                      params['class_g'].reshape(ncls * C),
                      params['class_beta'].reshape(ncls * C)], axis=0)

    whead = jnp.zeros((nreg * C, ktot), jnp.float32)
    bhead = jnp.zeros((ktot,), jnp.float32)
    off = 0
    for r, name in enumerate(REGION_NAMES):
        k = SUB_CLASS[r]
        whead = whead.at[r * C:(r + 1) * C, off:off + k].set(
            params[f'{name}_fc_w'])
        bhead = bhead.at[off:off + k].set(params[f'{name}_fc_b'])
        off += k

    return dict(wreg=wreg, preg=preg, wcls=wcls, pcls=pcls,
                whead=whead, bhead=bhead.reshape(1, ktot))


# ----------------------------- forward wrapper -----------------------------

def local_relationship_forward(x, packed):
    BT, HW, C = x.shape
    assert HW == 49
    N = 21
    M = BT * N
    nreg, ncls = 4, len(CLASS_REGION_IDX)
    ktot = sum(SUB_CLASS)

    x4 = x.reshape(BT, 7, 7, C)
    x_up = x4[:, 0:3].reshape(M, C)
    x_mid = x4[:, 2:5].reshape(M, C)
    x_down = x4[:, 4:7].reshape(M, C)
    # lane-pack the 4 region inputs (x_down feeds both down1 and down2 blocks)
    x_packed = jnp.concatenate([x_up, x_mid, x_down, x_down], axis=1)  # (M, 4C)

    # per-batch sequence-averaging matrix: S[b, b*N + n] = 1/N
    s_mat = jnp.repeat(jnp.eye(BT, dtype=jnp.float32), N, axis=1) / float(N)

    preds, fv = pl.pallas_call(
        functools.partial(_fused_kernel, eps=EPS),
        out_shape=(jax.ShapeDtypeStruct((BT, ktot), jnp.float32),
                   jax.ShapeDtypeStruct((BT, ncls * C), jnp.float32)),
        grid=(1,),
        in_specs=[
            pl.BlockSpec((M, nreg * C), lambda i: (0, 0)),          # x packed
            pl.BlockSpec((nreg * C, nreg * C), lambda i: (0, 0)),   # region W
            pl.BlockSpec((3, nreg * C), lambda i: (0, 0)),          # region b/g/beta
            pl.BlockSpec((nreg * C, ncls * C), lambda i: (0, 0)),   # class W
            pl.BlockSpec((3, ncls * C), lambda i: (0, 0)),          # class b/g/beta
            pl.BlockSpec((nreg * C, ktot), lambda i: (0, 0)),       # head W
            pl.BlockSpec((1, ktot), lambda i: (0, 0)),              # head b
            pl.BlockSpec((BT, M), lambda i: (0, 0)),                # seq-avg S
        ],
        out_specs=(
            pl.BlockSpec((BT, ktot), lambda i: (0, 0)),
            pl.BlockSpec((BT, ncls * C), lambda i: (0, 0)),
        ),
        compiler_params=pltpu.CompilerParams(
            dimension_semantics=("arbitrary",)),
    )(x_packed, packed['wreg'], packed['preg'], packed['wcls'],
      packed['pcls'], packed['whead'], packed['bhead'], s_mat)

    offs = [0]
    for k in SUB_CLASS:
        offs.append(offs[-1] + k)
    up_pred = preds[:, offs[0]:offs[1]]
    mid_pred = preds[:, offs[1]:offs[2]]
    down1_pred = preds[:, offs[2]:offs[3]]
    down2_pred = preds[:, offs[3]:offs[4]]
    f_v = fv.reshape(BT, ncls, C)
    return up_pred, mid_pred, down1_pred, down2_pred, f_v


# ----------------------------- pure-JAX reference -----------------------------

def _ref_linear_block(x3, w, b, g, beta):
    h = jnp.einsum('bnc,cd->bnd', x3, w) + b
    mu = h.mean(axis=(0, 1), keepdims=True)
    var = ((h - mu) ** 2).mean(axis=(0, 1), keepdims=True)
    return jnp.maximum((h - mu) * jax.lax.rsqrt(var + EPS) * g + beta, 0.0)


def reference_forward(x, params):
    BT, HW, C = x.shape
    x4 = x.reshape(BT, 7, 7, C)
    x_up = x4[:, 0:3].reshape(BT, 21, C)
    x_mid = x4[:, 2:5].reshape(BT, 21, C)
    x_down = x4[:, 4:7].reshape(BT, 21, C)
    regions_in = [x_up, x_mid, x_down, x_down]
    region_out = [_ref_linear_block(regions_in[i], params['region_w'][i],
                                    params['region_b'][i], params['region_g'][i],
                                    params['region_beta'][i]) for i in range(4)]
    preds = []
    for i, name in enumerate(REGION_NAMES):
        preds.append(region_out[i].mean(axis=1) @ params[f'{name}_fc_w']
                     + params[f'{name}_fc_b'])
    au = []
    for j in range(12):
        r = region_out[CLASS_REGION_IDX[j]]
        yj = _ref_linear_block(r, params['class_w'][j], params['class_b'][j],
                               params['class_g'][j], params['class_beta'][j])
        au.append(yj.mean(axis=1))
    f_v = jnp.stack(au, axis=1)
    return preds[0], preds[1], preds[2], preds[3], f_v


# ----------------------------- main -----------------------------

if __name__ == "__main__":
    BT, C = 2, 32                       # small in/out_channels for the demo
    num_classes = 12

    key = jax.random.PRNGKey(0)
    ks = jax.random.split(key, 16)
    bound = 1.0 / math.sqrt(C)

    # deterministic synthetic parameters (fc weights stored already transposed
    # to (C_in, C_out) so the kernel does x @ W directly)
    params = {
        'region_w': jax.random.normal(ks[0], (4, C, C), jnp.float32) * math.sqrt(2.0 / C),
        'region_b': jax.random.uniform(ks[1], (4, 1, C), jnp.float32, -bound, bound),
        'region_g': jnp.ones((4, 1, C), jnp.float32),
        'region_beta': jnp.zeros((4, 1, C), jnp.float32),
        'class_w': jax.random.normal(ks[2], (num_classes, C, C), jnp.float32) * math.sqrt(2.0 / C),
        'class_b': jax.random.uniform(ks[3], (num_classes, 1, C), jnp.float32, -bound, bound),
        'class_g': jnp.ones((num_classes, 1, C), jnp.float32),
        'class_beta': jnp.zeros((num_classes, 1, C), jnp.float32),
    }
    for i, name in enumerate(REGION_NAMES):
        k_ = SUB_CLASS[i]
        params[f'{name}_fc_w'] = jax.random.uniform(
            ks[4 + 2 * i], (C, k_), jnp.float32, -bound, bound)
        params[f'{name}_fc_b'] = jax.random.uniform(
            ks[5 + 2 * i], (k_,), jnp.float32, -bound, bound)

    x = jax.random.normal(ks[12], (BT, 49, C), jnp.float32)

    packed = pack_params(params, C)           # one-time weight repacking
    fwd = jax.jit(local_relationship_forward)
    outs = fwd(x, packed)
    outs = jax.block_until_ready(outs)

    refs = reference_forward(x, params)
    names = ["up_pred", "mid_pred", "down1_pred", "down2_pred", "f_v"]
    for name, o, r in zip(names, outs, refs):
        assert o.shape == r.shape, (name, o.shape, r.shape)
        err = float(jnp.max(jnp.abs(o - r)))
        assert jnp.allclose(o, r, atol=2e-3, rtol=2e-3), (name, err)

    print("KERNEL_OK")
</pallas_src>

<mosaic_0001>
module attributes {stable_mosaic.version = 11 : i64} {
  func.func @_fused_kernel(%arg0: i32, %arg1: memref<42x128xf32, #tpu.memory_space<vmem>>, %arg2: memref<128x128xf32, #tpu.memory_space<vmem>>, %arg3: memref<3x128xf32, #tpu.memory_space<vmem>>, %arg4: memref<128x384xf32, #tpu.memory_space<vmem>>, %arg5: memref<3x384xf32, #tpu.memory_space<vmem>>, %arg6: memref<128x42xf32, #tpu.memory_space<vmem>>, %arg7: memref<1x42xf32, #tpu.memory_space<vmem>>, %arg8: memref<2x42xf32, #tpu.memory_space<vmem>>, %arg9: memref<2x42xf32, #tpu.memory_space<vmem>>, %arg10: memref<2x384xf32, #tpu.memory_space<vmem>>) attributes {dimension_semantics = [#tpu.dimension_semantics<arbitrary>], iteration_bounds = array<i64: 1>, scalar_prefetch = 0 : i64, scratch_operands = 0 : i64, tpu.core_type = #tpu.core_type<tc>, window_params = [{pipeline_mode = #tpu.pipeline_mode<synchronous>, transform_indices = @transform_0, window_bounds = array<i64: 42, 128>}, {pipeline_mode = #tpu.pipeline_mode<synchronous>, transform_indices = @transform_1, window_bounds = array<i64: 128, 128>}, {pipeline_mode = #tpu.pipeline_mode<synchronous>, transform_indices = @transform_2, window_bounds = array<i64: 3, 128>}, {pipeline_mode = #tpu.pipeline_mode<synchronous>, transform_indices = @transform_3, window_bounds = array<i64: 128, 384>}, {pipeline_mode = #tpu.pipeline_mode<synchronous>, transform_indices = @transform_4, window_bounds = array<i64: 3, 384>}, {pipeline_mode = #tpu.pipeline_mode<synchronous>, transform_indices = @transform_5, window_bounds = array<i64: 128, 42>}, {pipeline_mode = #tpu.pipeline_mode<synchronous>, transform_indices = @transform_6, window_bounds = array<i64: 1, 42>}, {pipeline_mode = #tpu.pipeline_mode<synchronous>, transform_indices = @transform_7, window_bounds = array<i64: 2, 42>}, {pipeline_mode = #tpu.pipeline_mode<synchronous>, transform_indices = @transform_8, window_bounds = array<i64: 2, 42>}, {pipeline_mode = #tpu.pipeline_mode<synchronous>, transform_indices = @transform_9, window_bounds = array<i64: 2, 384>}]} {
    %c0 = arith.constant 0 : index
    %c0_0 = arith.constant 0 : index
    %0 = vector.load %arg1[%c0, %c0_0] : memref<42x128xf32, #tpu.memory_space<vmem>>, vector<42x128xf32>
    %c0_1 = arith.constant 0 : index
    %c0_2 = arith.constant 0 : index
    %1 = vector.load %arg8[%c0_1, %c0_2] : memref<2x42xf32, #tpu.memory_space<vmem>>, vector<2x42xf32>
    %c0_3 = arith.constant 0 : index
    %c0_4 = arith.constant 0 : index
    %2 = vector.load %arg2[%c0_3, %c0_4] : memref<128x128xf32, #tpu.memory_space<vmem>>, vector<128x128xf32>
    %cst = arith.constant dense<0.000000e+00> : vector<42x128xf32>
    %3 = tpu.matmul %0, %2, %cst {dimension_numbers = #tpu.dot_dimension_numbers<[1], [0], [0], [1], [0, 0, 1, 1], [], []>} : vector<42x128xf32>, vector<128x128xf32>, vector<42x128xf32> -> vector<42x128xf32>
    %c0_5 = arith.constant 0 : index
    %c0_6 = arith.constant 0 : index
    %4 = vector.load %arg3[%c0_5, %c0_6] : memref<3x128xf32, #tpu.memory_space<vmem>>, vector<1x128xf32>
    %5 = vector.broadcast %4 : vector<1x128xf32> to vector<42x128xf32>
    %6 = arith.addf %3, %5 : vector<42x128xf32>
    %cst_7 = arith.constant dense<0.000000e+00> : vector<128xf32>
    %7 = vector.multi_reduction <add>, %6, %cst_7 [0] : vector<42x128xf32> to vector<128xf32>
    %8 = vector.shape_cast %7 : vector<128xf32> to vector<1x128xf32>
    %cst_8 = arith.constant 4.200000e+01 : f32
    %9 = vector.broadcast %cst_8 : f32 to vector<1x128xf32>
    %10 = arith.divf %8, %9 : vector<1x128xf32>
    %11 = vector.broadcast %10 : vector<1x128xf32> to vector<42x128xf32>
    %12 = arith.subf %6, %11 : vector<42x128xf32>
    %13 = arith.mulf %12, %12 : vector<42x128xf32>
    %cst_9 = arith.constant dense<0.000000e+00> : vector<128xf32>
    %14 = vector.multi_reduction <add>, %13, %cst_9 [0] : vector<42x128xf32> to vector<128xf32>
    %15 = vector.shape_cast %14 : vector<128xf32> to vector<1x128xf32>
    %cst_10 = arith.constant 4.200000e+01 : f32
    %16 = vector.broadcast %cst_10 : f32 to vector<1x128xf32>
    %17 = arith.divf %15, %16 : vector<1x128xf32>
    %18 = vector.broadcast %10 : vector<1x128xf32> to vector<42x128xf32>
    %19 = arith.subf %6, %18 : vector<42x128xf32>
    %cst_11 = arith.constant 9.99999974E-6 : f32
    %20 = vector.broadcast %cst_11 : f32 to vector<1x128xf32>
    %21 = arith.addf %17, %20 : vector<1x128xf32>
    %22 = math.rsqrt %21 : vector<1x128xf32>
    %23 = vector.broadcast %22 : vector<1x128xf32> to vector<42x128xf32>
    %24 = arith.mulf %19, %23 : vector<42x128xf32>
    %c1 = arith.constant 1 : index
    %c0_12 = arith.constant 0 : index
    %25 = vector.load %arg3[%c1, %c0_12] : memref<3x128xf32, #tpu.memory_space<vmem>>, vector<1x128xf32>
    %26 = vector.broadcast %25 : vector<1x128xf32> to vector<42x128xf32>
    %27 = arith.mulf %24, %26 : vector<42x128xf32>
    %c2 = arith.constant 2 : index
    %c0_13 = arith.constant 0 : index
    %28 = vector.load %arg3[%c2, %c0_13] : memref<3x128xf32, #tpu.memory_space<vmem>>, vector<1x128xf32>
    %29 = vector.broadcast %28 : vector<1x128xf32> to vector<42x128xf32>
    %30 = arith.addf %27, %29 : vector<42x128xf32>
    %cst_14 = arith.constant 0.000000e+00 : f32
    %31 = vector.broadcast %cst_14 : f32 to vector<42x128xf32>
    %32 = arith.maximumf %30, %31 : vector<42x128xf32>
    %cst_15 = arith.constant dense<0.000000e+00> : vector<2x128xf32>
    %33 = tpu.matmul %1, %32, %cst_15 {dimension_numbers = #tpu.dot_dimension_numbers<[1], [0], [0], [1], [0, 0, 1, 1], [], []>} : vector<2x42xf32>, vector<42x128xf32>, vector<2x128xf32> -> vector<2x128xf32>
    %c0_16 = arith.constant 0 : index
    %c0_17 = arith.constant 0 : index
    %34 = vector.load %arg6[%c0_16, %c0_17] : memref<128x42xf32, #tpu.memory_space<vmem>>, vector<128x42xf32>
    %cst_18 = arith.constant dense<0.000000e+00> : vector<2x42xf32>
    %35 = tpu.matmul %33, %34, %cst_18 {dimension_numbers = #tpu.dot_dimension_numbers<[1], [0], [0], [1], [0, 0, 1, 1], [], []>} : vector<2x128xf32>, vector<128x42xf32>, vector<2x42xf32> -> vector<2x42xf32>
    %c0_19 = arith.constant 0 : index
    %c0_20 = arith.constant 0 : index
    %36 = vector.load %arg7[%c0_19, %c0_20] : memref<1x42xf32, #tpu.memory_space<vmem>>, vector<1x42xf32>
    %37 = vector.broadcast %36 : vector<1x42xf32> to vector<2x42xf32>
    %38 = arith.addf %35, %37 : vector<2x42xf32>
    %c0_21 = arith.constant 0 : index
    %c0_22 = arith.constant 0 : index
    %39 = vector.load %arg9[%c0_21, %c0_22] : memref<2x42xf32, #tpu.memory_space<vmem>>, vector<2x42xf32>
    tpu.vector_store %arg9[%c0_21, %c0_22], %38 {strides = array<i32>} : memref<2x42xf32, #tpu.memory_space<vmem>>, vector<2x42xf32>,
    %c0_23 = arith.constant 0 : index
    %c0_24 = arith.constant 0 : index
    %40 = vector.load %arg4[%c0_23, %c0_24] : memref<128x384xf32, #tpu.memory_space<vmem>>, vector<128x384xf32>
    %cst_25 = arith.constant dense<0.000000e+00> : vector<42x384xf32>
    %41 = tpu.matmul %32, %40, %cst_25 {dimension_numbers = #tpu.dot_dimension_numbers<[1], [0], [0], [1], [0, 0, 1, 1], [], []>} : vector<42x128xf32>, vector<128x384xf32>, vector<42x384xf32> -> vector<42x384xf32>
    %c0_26 = arith.constant 0 : index
    %c0_27 = arith.constant 0 : index
    %42 = vector.load %arg5[%c0_26, %c0_27] : memref<3x384xf32, #tpu.memory_space<vmem>>, vector<1x384xf32>
    %43 = vector.broadcast %42 : vector<1x384xf32> to vector<42x384xf32>
    %44 = arith.addf %41, %43 : vector<42x384xf32>
    %cst_28 = arith.constant dense<0.000000e+00> : vector<384xf32>
    %45 = vector.multi_reduction <add>, %44, %cst_28 [0] : vector<42x384xf32> to vector<384xf32>
    %46 = vector.shape_cast %45 : vector<384xf32> to vector<1x384xf32>
    %cst_29 = arith.constant 4.200000e+01 : f32
    %47 = vector.broadcast %cst_29 : f32 to vector<1x384xf32>
    %48 = arith.divf %46, %47 : vector<1x384xf32>
    %49 = vector.broadcast %48 : vector<1x384xf32> to vector<42x384xf32>
    %50 = arith.subf %44, %49 : vector<42x384xf32>
    %51 = arith.mulf %50, %50 : vector<42x384xf32>
    %cst_30 = arith.constant dense<0.000000e+00> : vector<384xf32>
    %52 = vector.multi_reduction <add>, %51, %cst_30 [0] : vector<42x384xf32> to vector<384xf32>
    %53 = vector.shape_cast %52 : vector<384xf32> to vector<1x384xf32>
    %cst_31 = arith.constant 4.200000e+01 : f32
    %54 = vector.broadcast %cst_31 : f32 to vector<1x384xf32>
    %55 = arith.divf %53, %54 : vector<1x384xf32>
    %56 = vector.broadcast %48 : vector<1x384xf32> to vector<42x384xf32>
    %57 = arith.subf %44, %56 : vector<42x384xf32>
    %cst_32 = arith.constant 9.99999974E-6 : f32
    %58 = vector.broadcast %cst_32 : f32 to vector<1x384xf32>
    %59 = arith.addf %55, %58 : vector<1x384xf32>
    %60 = math.rsqrt %59 : vector<1x384xf32>
    %61 = vector.broadcast %60 : vector<1x384xf32> to vector<42x384xf32>
    %62 = arith.mulf %57, %61 : vector<42x384xf32>
    %c1_33 = arith.constant 1 : index
    %c0_34 = arith.constant 0 : index
    %63 = vector.load %arg5[%c1_33, %c0_34] : memref<3x384xf32, #tpu.memory_space<vmem>>, vector<1x384xf32>
    %64 = vector.broadcast %63 : vector<1x384xf32> to vector<42x384xf32>
    %65 = arith.mulf %62, %64 : vector<42x384xf32>
    %c2_35 = arith.constant 2 : index
    %c0_36 = arith.constant 0 : index
    %66 = vector.load %arg5[%c2_35, %c0_36] : memref<3x384xf32, #tpu.memory_space<vmem>>, vector<1x384xf32>
    %67 = vector.broadcast %66 : vector<1x384xf32> to vector<42x384xf32>
    %68 = arith.addf %65, %67 : vector<42x384xf32>
    %cst_37 = arith.constant 0.000000e+00 : f32
    %69 = vector.broadcast %cst_37 : f32 to vector<42x384xf32>
    %70 = arith.maximumf %68, %69 : vector<42x384xf32>
    %cst_38 = arith.constant dense<0.000000e+00> : vector<2x384xf32>
    %71 = tpu.matmul %1, %70, %cst_38 {dimension_numbers = #tpu.dot_dimension_numbers<[1], [0], [0], [1], [0, 0, 1, 1], [], []>} : vector<2x42xf32>, vector<42x384xf32>, vector<2x384xf32> -> vector<2x384xf32>
    %c0_39 = arith.constant 0 : index
    %c0_40 = arith.constant 0 : index
    %72 = vector.load %arg10[%c0_39, %c0_40] : memref<2x384xf32, #tpu.memory_space<vmem>>, vector<2x384xf32>
    tpu.vector_store %arg10[%c0_39, %c0_40], %71 {strides = array<i32>} : memref<2x384xf32, #tpu.memory_space<vmem>>, vector<2x384xf32>,
    return
  }
  func.func @transform_0(%arg0: i32) -> (i32, i32) {
    %c0_i32 = arith.constant 0 : i32
    %c0_i32_0 = arith.constant 0 : i32
    %c0_i32_1 = arith.constant 0 : i32
    return %c0_i32, %c0_i32_0 : i32, i32
  }
  func.func @transform_1(%arg0: i32) -> (i32, i32) {
    %c0_i32 = arith.constant 0 : i32
    %c0_i32_0 = arith.constant 0 : i32
    %c0_i32_1 = arith.constant 0 : i32
    return %c0_i32, %c0_i32_0 : i32, i32
  }
  func.func @transform_2(%arg0: i32) -> (i32, i32) {
    %c0_i32 = arith.constant 0 : i32
    %c0_i32_0 = arith.constant 0 : i32
    %c0_i32_1 = arith.constant 0 : i32
    return %c0_i32, %c0_i32_0 : i32, i32
  }
  func.func @transform_3(%arg0: i32) -> (i32, i32) {
    %c0_i32 = arith.constant 0 : i32
    %c0_i32_0 = arith.constant 0 : i32
    %c0_i32_1 = arith.constant 0 : i32
    return %c0_i32, %c0_i32_0 : i32, i32
  }
  func.func @transform_4(%arg0: i32) -> (i32, i32) {
    %c0_i32 = arith.constant 0 : i32
    %c0_i32_0 = arith.constant 0 : i32
    %c0_i32_1 = arith.constant 0 : i32
    return %c0_i32, %c0_i32_0 : i32, i32
  }
  func.func @transform_5(%arg0: i32) -> (i32, i32) {
    %c0_i32 = arith.constant 0 : i32
    %c0_i32_0 = arith.constant 0 : i32
    %c0_i32_1 = arith.constant 0 : i32
    return %c0_i32, %c0_i32_0 : i32, i32
  }
  func.func @transform_6(%arg0: i32) -> (i32, i32) {
    %c0_i32 = arith.constant 0 : i32
    %c0_i32_0 = arith.constant 0 : i32
    %c0_i32_1 = arith.constant 0 : i32
    return %c0_i32, %c0_i32_0 : i32, i32
  }
  func.func @transform_7(%arg0: i32) -> (i32, i32) {
    %c0_i32 = arith.constant 0 : i32
    %c0_i32_0 = arith.constant 0 : i32
    %c0_i32_1 = arith.constant 0 : i32
    return %c0_i32, %c0_i32_0 : i32, i32
  }
  func.func @transform_8(%arg0: i32) -> (i32, i32) {
    %c0_i32 = arith.constant 0 : i32
    %c0_i32_0 = arith.constant 0 : i32
    %c0_i32_1 = arith.constant 0 : i32
    return %c0_i32, %c0_i32_0 : i32, i32
  }
  func.func @transform_9(%arg0: i32) -> (i32, i32) {
    %c0_i32 = arith.constant 0 : i32
    %c0_i32_0 = arith.constant 0 : i32
    %c0_i32_1 = arith.constant 0 : i32
    return %c0_i32, %c0_i32_0 : i32, i32
  }
}

</mosaic_0001>

<llo_original>
// kernel: local_relationship_forward.1
$region0: #{local_relationship_forward.1}
  #allocation0 [shape = 'u32[]', space=smem, size = 0x4, offset = 0x4, fixed_abs, tag = 'smem constant byte address 0x4 - core index']
  #allocation1 [shape = 'u32[144,128]{1,0:T(1,128)}', space=vmem, size = 0x12000, scoped, tag = 'internal scratch']
  %s0 = inlined_call_operand.vmem [shape: f32[42,128], index: 0, kind: input, shape index: {}]
  %s1 = inlined_call_operand.vmem [shape: f32[128,128], index: 1, kind: input, shape index: {}]
  %s2 = inlined_call_operand.vmem [shape: f32[3,128], index: 2, kind: input, shape index: {}]
  %s3 = inlined_call_operand.vmem [shape: f32[128,384], index: 3, kind: input, shape index: {}]
  %s4 = inlined_call_operand.vmem [shape: f32[3,384], index: 4, kind: input, shape index: {}]
  %s5 = inlined_call_operand.vmem [shape: f32[128,42], index: 5, kind: input, shape index: {}]
  %s6 = inlined_call_operand.vmem [shape: f32[1,42], index: 6, kind: input, shape index: {}]
  %s7 = inlined_call_operand.vmem [shape: f32[2,42], index: 7, kind: input, shape index: {}]
  %s8 = inlined_call_operand.vmem [shape: f32[2,42], index: 8, kind: output, shape index: {0}]
  %s9 = inlined_call_operand.vmem [shape: f32[2,384], index: 9, kind: output, shape index: {1}]
  %10 = xla_tuple %s8, %s9
  %s11 = sld [smem:[#allocation0]]
  $region50: #{local_relationship_forward.1} parent=0
    _
  %s13 = ssub.s32 1, %s11
  %s14 = scalar_select 0, %s13, %s11
  // Predicated region
  $region2: #{local_relationship_forward.1} parent=0 // pred_check
    _
  $region3: #{local_relationship_forward.1} parent=0 // pred_check_branch
    %16 = sbr.rel (0) target = $region5
  $region4: #{local_relationship_forward.1} parent=0 // pred_region
    _
  $region5: #{local_relationship_forward.1} parent=0 // pred_fallthru
    _
  // Predicated region
  $region6: #{local_relationship_forward.1} parent=0 // pred_check
    _
  $region7: #{local_relationship_forward.1} parent=0 // pred_check_branch
    %18 = sbr.rel (0) target = $region9
  $region8: #{local_relationship_forward.1} parent=0 // pred_region
    _
  $region9: #{local_relationship_forward.1} parent=0 // pred_fallthru
    _
  // Predicated region
  $region10: #{local_relationship_forward.1} parent=0 // pred_check
    _
  $region11: #{local_relationship_forward.1} parent=0 // pred_check_branch
    %20 = sbr.rel (0) target = $region13
  $region12: #{local_relationship_forward.1} parent=0 // pred_region
    _
  $region13: #{local_relationship_forward.1} parent=0 // pred_fallthru
    _
  // Predicated region
  $region14: #{local_relationship_forward.1} parent=0 // pred_check
    _
  $region15: #{local_relationship_forward.1} parent=0 // pred_check_branch
    %22 = sbr.rel (0) target = $region17
  $region16: #{local_relationship_forward.1} parent=0 // pred_region
    _
  $region17: #{local_relationship_forward.1} parent=0 // pred_fallthru
    _
  // Predicated region
  $region18: #{local_relationship_forward.1} parent=0 // pred_check
    _
  $region19: #{local_relationship_forward.1} parent=0 // pred_check_branch
    %24 = sbr.rel (0) target = $region21
  $region20: #{local_relationship_forward.1} parent=0 // pred_region
    _
  $region21: #{local_relationship_forward.1} parent=0 // pred_fallthru
    _
  // Predicated region
  $region22: #{local_relationship_forward.1} parent=0 // pred_check
    _
  $region23: #{local_relationship_forward.1} parent=0 // pred_check_branch
    %26 = sbr.rel (0) target = $region25
  $region24: #{local_relationship_forward.1} parent=0 // pred_region
    _
  $region25: #{local_relationship_forward.1} parent=0 // pred_fallthru
    _
  // Predicated region
  $region26: #{local_relationship_forward.1} parent=0 // pred_check
    _
  $region27: #{local_relationship_forward.1} parent=0 // pred_check_branch
    %28 = sbr.rel (0) target = $region29
  $region28: #{local_relationship_forward.1} parent=0 // pred_region
    _
  $region29: #{local_relationship_forward.1} parent=0 // pred_fallthru
    _
  // Predicated region
  $region30: #{local_relationship_forward.1} parent=0 // pred_check
    _
  $region31: #{local_relationship_forward.1} parent=0 // pred_check_branch
    %30 = sbr.rel (0) target = $region33
  $region32: #{local_relationship_forward.1} parent=0 // pred_region
    _
  $region33: #{local_relationship_forward.1} parent=0 // pred_fallthru
    _
  %v31 = vld [vmem:[%s0] sm:$0xff]
  %v32 = vld [vmem:[%s0 + $0x8] sm:$0xff]
  %v33 = vld [vmem:[%s0 + $0x10] sm:$0xff]
  %v34 = vld [vmem:[%s0 + $0x18] sm:$0xff]
  %v35 = vld [vmem:[%s0 + $0x20] sm:$0xff]
  %v36 = vld [vmem:[%s0 + $0x28] sm:$0x3]
  %v37 = vld [vmem:[%s7] sm:$0x3]
  %v38 = vld [vmem:[%s1] sm:$0xff]
  %v39 = vld [vmem:[%s1 + $0x8] sm:$0xff]
  %v40 = vld [vmem:[%s1 + $0x10] sm:$0xff]
  %v41 = vld [vmem:[%s1 + $0x18] sm:$0xff]
  %v42 = vld [vmem:[%s1 + $0x20] sm:$0xff]
  %v43 = vld [vmem:[%s1 + $0x28] sm:$0xff]
  %v44 = vld [vmem:[%s1 + $0x30] sm:$0xff]
  %v45 = vld [vmem:[%s1 + $0x38] sm:$0xff]
  %v46 = vld [vmem:[%s1 + $0x40] sm:$0xff]
  %v47 = vld [vmem:[%s1 + $0x48] sm:$0xff]
  %v48 = vld [vmem:[%s1 + $0x50] sm:$0xff]
  %v49 = vld [vmem:[%s1 + $0x58] sm:$0xff]
  %v50 = vld [vmem:[%s1 + $0x60] sm:$0xff]
  %v51 = vld [vmem:[%s1 + $0x68] sm:$0xff]
  %v52 = vld [vmem:[%s1 + $0x70] sm:$0xff]
  %v53 = vld [vmem:[%s1 + $0x78] sm:$0xff]
  %v54 = vld [vmem:[%s2] sm:$0x1]
  %v55 = vlaneseq
  %v56 = vshrl.u32 %v55, 7
  %v57 = vsub.s32 0, %v56
  %v58 = vrot.slane %v54, %v57
  %59 = vmatprep.subr.mxu0 0.0
  %60 = vmatpush1.msra.mxu0 %v38
  %61 = vmatprep.subr.mxu0 0.0
  %62 = vmatpush1.msra.mxu0 %v39
  %63 = vmatprep.subr.mxu0 0.0
  %64 = vmatpush1.msra.mxu0 %v40
  %65 = vmatprep.subr.mxu0 0.0
  %66 = vmatpush1.msra.mxu0 %v41
  %67 = vmatprep.subr.mxu0 0.0
  %68 = vmatpush1.msra.mxu0 %v42
  %69 = vmatprep.subr.mxu0 0.0
  %70 = vmatpush1.msra.mxu0 %v43
  %71 = vmatprep.subr.mxu0 0.0
  %72 = vmatpush1.msra.mxu0 %v44
  %73 = vmatprep.subr.mxu0 0.0
  %74 = vmatpush1.msra.mxu0 %v45
  %75 = vmatprep.subr.mxu0 0.0
  %76 = vmatpush1.msra.mxu0 %v46
  %77 = vmatprep.subr.mxu0 0.0
  %78 = vmatpush1.msra.mxu0 %v47
  %79 = vmatprep.subr.mxu0 0.0
  %80 = vmatpush1.msra.mxu0 %v48
  %81 = vmatprep.subr.mxu0 0.0
  %82 = vmatpush1.msra.mxu0 %v49
  %83 = vmatprep.subr.mxu0 0.0
  %84 = vmatpush1.msra.mxu0 %v50
  %85 = vmatprep.subr.mxu0 0.0
  %86 = vmatpush1.msra.mxu0 %v51
  %87 = vmatprep.subr.mxu0 0.0
  %88 = vmatpush1.msra.mxu0 %v52
  %89 = vmatprep.subr.mxu0 0.0
  %90 = vmatpush1.msra.mxu0 %v53
  %91 = vmatprep.subr.mxu0 0.0
  %92 = vmatpush1.msra.mxu0 0.0
  %93 = vmatprep.subr.mxu0 0.0
  %94 = vmatpush1.msra.mxu0 0.0
  %95 = vmatprep.subr.mxu0 0.0
  %96 = vmatpush1.msra.mxu0 0.0
  %97 = vmatprep.subr.mxu0 0.0
  %98 = vmatpush1.msra.mxu0 0.0
  %99 = vmatprep.subr.mxu0 0.0
  %100 = vmatpush1.msra.mxu0 0.0
  %101 = vmatprep.subr.mxu0 0.0
  %102 = vmatpush1.msra.mxu0 0.0
  %103 = vmatprep.subr.mxu0 0.0
  %104 = vmatpush1.msra.mxu0 0.0
  %105 = vmatprep.subr.mxu0 0.0
  %106 = vmatpush1.msra.mxu0 0.0
  %107 = vmatprep.subr.mxu0 0.0
  %108 = vmatpush1.msra.mxu0 0.0
  %109 = vmatprep.subr.mxu0 0.0
  %110 = vmatpush1.msra.mxu0 0.0
  %111 = vmatprep.subr.mxu0 0.0
  %112 = vmatpush1.msra.mxu0 0.0
  %113 = vmatprep.subr.mxu0 0.0
  %114 = vmatpush1.msra.mxu0 0.0
  %115 = vmatprep.subr.mxu0 0.0
  %116 = vmatpush1.msra.mxu0 0.0
  %117 = vmatprep.subr.mxu0 0.0
  %118 = vmatpush1.msra.mxu0 0.0
  %119 = vmatprep.subr.mxu0 0.0
  %120 = vmatpush1.msra.mxu0 0.0
  %121 = vmatprep.subr.mxu0 0.0
  %122 = vmatpush1.msra.mxu0 0.0
  %123 = vmatprep.mubr.f32.mxu0 0.0
  %124 = vmatmul.mubr.f32.gmra.mrb[0].mxu0 %v31
  %v125 = vpop.f32.mrb[0].mxu0
  %v126 = vadd.f32 %v58, %v125
  %v127 = vpop.f32.mrb[0].mxu0
  %128 = vmatprep.mubr.f32.mxu0 0.0
  %129 = vmatmul.mubr.f32.gmra.mrb[0].mxu0 %v32
  %v130 = vpop.f32.mrb[0].mxu0
  %v131 = vadd.f32 %v58, %v130
  %v132 = vpop.f32.mrb[0].mxu0
  %133 = vmatprep.mubr.f32.mxu0 0.0
  %134 = vmatmul.mubr.f32.gmra.mrb[0].mxu0 %v33
  %v135 = vpop.f32.mrb[0].mxu0
  %v136 = vadd.f32 %v58, %v135
  %v137 = vpop.f32.mrb[0].mxu0
  %138 = vmatprep.mubr.f32.mxu0 0.0
  %139 = vmatmul.mubr.f32.gmra.mrb[0].mxu0 %v34
  %v140 = vpop.f32.mrb[0].mxu0
  %v141 = vadd.f32 %v58, %v140
  %v142 = vpop.f32.mrb[0].mxu0
  %143 = vmatprep.mubr.f32.mxu0 0.0
  %144 = vmatmul.mubr.f32.gmra.mrb[0].mxu0 %v35
  %v145 = vpop.f32.mrb[0].mxu0
  %v146 = vadd.f32 %v58, %v145
  %v147 = vpop.f32.mrb[0].mxu0
  %148 = vmatprep.mubr.f32.mxu0 0.0
  %149 = vmatmul.mubr.f32.gmra.mrb[0].mxu0 %v36
  %v150 = vpop.f32.mrb[0].mxu0
  %v151 = vadd.f32 %v58, %v150
  %v152 = vpop.f32.mrb[0].mxu0
  %153 = vdwg.mxu0
  %v154 = vadd.f32 %v126, %v131
  %v155 = vadd.f32 %v154, %v136
  %v156 = vadd.f32 %v155, %v141
  %v157 = vadd.f32 %v156, %v146
  %vm158 = vcmask 1041408
  %v159 = vsel %vm158, %v151, 0.0
  %v160 = vadd.f32 %v157, %v159
  %v161 = vrot.slane %v160, 4
  %v162 = vadd.f32 %v160, %v161
  %v163 = vrot.slane %v162, 2
  %v164 = vadd.f32 %v162, %v163
  %v165 = vrot.slane %v164, 1
  %v166 = vadd.f32 %v164, %v165
  %v167 = vrcp.pop 42.0
  %v168 = vmul.f32 %v166, %v167
  %v169 = vsub.f32 %v126, %v168
  %v170 = vsub.f32 %v131, %v168
  %v171 = vsub.f32 %v136, %v168
  %v172 = vsub.f32 %v141, %v168
  %v173 = vsub.f32 %v146, %v168
  %v174 = vsub.f32 %v151, %v168
  %v175 = vmul.f32 %v169, %v169
  %v176 = vmul.f32 %v170, %v170
  %v177 = vmul.f32 %v171, %v171
  %v178 = vmul.f32 %v172, %v172
  %v179 = vmul.f32 %v173, %v173
  %v180 = vmul.f32 %v174, %v174
  %v181 = vadd.f32 %v175, %v176
  %v182 = vadd.f32 %v181, %v177
  %v183 = vadd.f32 %v182, %v178
  %v184 = vadd.f32 %v183, %v179
  %v185 = vsel %vm158, %v180, 0.0
  %v186 = vadd.f32 %v184, %v185
  %v187 = vrot.slane %v186, 4
  %v188 = vadd.f32 %v186, %v187
  %v189 = vrot.slane %v188, 2
  %v190 = vadd.f32 %v188, %v189
  %v191 = vrot.slane %v190, 1
  %v192 = vadd.f32 %v190, %v191
  %v193 = vmul.f32 %v192, %v167
  %v194 = vadd.f32 %v193, 1e-05
  %v195 = vrsqrt.pop %v194
  %v196 = vmul.f32 %v169, %v195
  %v197 = vmul.f32 %v170, %v195
  %v198 = vmul.f32 %v171, %v195
  %v199 = vmul.f32 %v172, %v195
  %v200 = vmul.f32 %v173, %v195
  %v201 = vmul.f32 %v174, %v195
  %v202 = vld [vmem:[%s2 + $0x1] sm:$0x1]
  %v203 = vlaneseq
  %v204 = vshrl.u32 %v203, 7
  %v205 = vsub.s32 0, %v204
  %v206 = vrot.slane %v202, %v205
  %v207 = vmul.f32 %v196, %v206
  %v208 = vmul.f32 %v197, %v206
  %v209 = vmul.f32 %v198, %v206
  %v210 = vmul.f32 %v199, %v206
  %v211 = vmul.f32 %v200, %v206
  %v212 = vmul.f32 %v201, %v206
  %v213 = vld [vmem:[%s2 + $0x2] sm:$0x1]
  %v214 = vlaneseq
  %v215 = vshrl.u32 %v214, 7
  %v216 = vsub.s32 0, %v215
  %v217 = vrot.slane %v213, %v216
  %v218 = vadd.f32 %v207, %v217
  %v219 = vadd.f32 %v208, %v217
  %v220 = vadd.f32 %v209, %v217
  %v221 = vadd.f32 %v210, %v217
  %v222 = vadd.f32 %v211, %v217
  %v223 = vadd.f32 %v212, %v217
  %v224 = vmax.f32 %v218, 0.0
  %v225 = vmax.f32 %v219, 0.0
  %v226 = vmax.f32 %v220, 0.0
  %v227 = vmax.f32 %v221, 0.0
  %v228 = vmax.f32 %v222, 0.0
  %v229 = vmax.f32 %v223, 0.0
  %vm230 = vcmask 343040
  %v232 = vsel %vm230, %v37, 0
  %v235 = vsel %vm158, %v229, 0
  %237 = vmatprep.subr.mxu0 0.0
  %238 = vmatpush1.msra.mxu0 %v224
  %239 = vmatprep.subr.mxu0 0.0
  %240 = vmatpush1.msra.mxu0 %v225
  %241 = vmatprep.subr.mxu0 0.0
  %242 = vmatpush1.msra.mxu0 %v226
  %243 = vmatprep.subr.mxu0 0.0
  %244 = vmatpush1.msra.mxu0 %v227
  %245 = vmatprep.subr.mxu0 0.0
  %246 = vmatpush1.msra.mxu0 %v228
  %247 = vmatprep.subr.mxu0 0.0
  %248 = vmatpush1.msra.mxu0 %v235
  %249 = vmatprep.subr.mxu0 0.0
  %250 = vmatpush1.msra.mxu0 0.0
  %251 = vmatprep.subr.mxu0 0.0
  %252 = vmatpush1.msra.mxu0 0.0
  %253 = vmatprep.subr.mxu0 0.0
  %254 = vmatpush1.msra.mxu0 0.0
  %255 = vmatprep.subr.mxu0 0.0
  %256 = vmatpush1.msra.mxu0 0.0
  %257 = vmatprep.subr.mxu0 0.0
  %258 = vmatpush1.msra.mxu0 0.0
  %259 = vmatprep.subr.mxu0 0.0
  %260 = vmatpush1.msra.mxu0 0.0
  %261 = vmatprep.subr.mxu0 0.0
  %262 = vmatpush1.msra.mxu0 0.0
  %263 = vmatprep.subr.mxu0 0.0
  %264 = vmatpush1.msra.mxu0 0.0
  %265 = vmatprep.subr.mxu0 0.0
  %266 = vmatpush1.msra.mxu0 0.0
  %267 = vmatprep.subr.mxu0 0.0
  %268 = vmatpush1.msra.mxu0 0.0
  %269 = vmatprep.subr.mxu0 0.0
  %270 = vmatpush1.msra.mxu0 0.0
  %271 = vmatprep.subr.mxu0 0.0
  %272 = vmatpush1.msra.mxu0 0.0
  %273 = vmatprep.subr.mxu0 0.0
  %274 = vmatpush1.msra.mxu0 0.0
  %275 = vmatprep.subr.mxu0 0.0
  %276 = vmatpush1.msra.mxu0 0.0
  %277 = vmatprep.subr.mxu0 0.0
  %278 = vmatpush1.msra.mxu0 0.0
  %279 = vmatprep.subr.mxu0 0.0
  %280 = vmatpush1.msra.mxu0 0.0
  %281 = vmatprep.subr.mxu0 0.0
  %282 = vmatpush1.msra.mxu0 0.0
  %283 = vmatprep.subr.mxu0 0.0
  %284 = vmatpush1.msra.mxu0 0.0
  %285 = vmatprep.subr.mxu0 0.0
  %286 = vmatpush1.msra.mxu0 0.0
  %287 = vmatprep.subr.mxu0 0.0
  %288 = vmatpush1.msra.mxu0 0.0
  %289 = vmatprep.subr.mxu0 0.0
  %290 = vmatpush1.msra.mxu0 0.0
  %291 = vmatprep.subr.mxu0 0.0
  %292 = vmatpush1.msra.mxu0 0.0
  %293 = vmatprep.subr.mxu0 0.0
  %294 = vmatpush1.msra.mxu0 0.0
  %295 = vmatprep.subr.mxu0 0.0
  %296 = vmatpush1.msra.mxu0 0.0
  %297 = vmatprep.subr.mxu0 0.0
  %298 = vmatpush1.msra.mxu0 0.0
  %299 = vmatprep.subr.mxu0 0.0
  %300 = vmatpush1.msra.mxu0 0.0
  %301 = vmatprep.mubr.f32.mxu0 0.0
  %302 = vmatmul.mubr.f32.gmra.mrb[0].mxu0 %v232
  %v303 = vpop.f32.mrb[0].mxu0
  %v304 = vadd.f32 0.0, %v303
  %v305 = vpop.f32.mrb[0].mxu0
  %306 = vdwg.mxu0
  %v307 = vld [vmem:[%s5] sm:$0xff]
  %v308 = vld [vmem:[%s5 + $0x8] sm:$0xff]
  %v309 = vld [vmem:[%s5 + $0x10] sm:$0xff]
  %v310 = vld [vmem:[%s5 + $0x18] sm:$0xff]
  %v311 = vld [vmem:[%s5 + $0x20] sm:$0xff]
  %v312 = vld [vmem:[%s5 + $0x28] sm:$0xff]
  %v313 = vld [vmem:[%s5 + $0x30] sm:$0xff]
  %v314 = vld [vmem:[%s5 + $0x38] sm:$0xff]
  %v315 = vld [vmem:[%s5 + $0x40] sm:$0xff]
  %v316 = vld [vmem:[%s5 + $0x48] sm:$0xff]
  %v317 = vld [vmem:[%s5 + $0x50] sm:$0xff]
  %v318 = vld [vmem:[%s5 + $0x58] sm:$0xff]
  %v319 = vld [vmem:[%s5 + $0x60] sm:$0xff]
  %v320 = vld [vmem:[%s5 + $0x68] sm:$0xff]
  %v321 = vld [vmem:[%s5 + $0x70] sm:$0xff]
  %v322 = vld [vmem:[%s5 + $0x78] sm:$0xff]
  %v323 = vld [vmem:[%s6] sm:$0x1]
  %v325 = vlaneseq
  %v326 = vshrl.u32 %v325, 7
  %v327 = vsub.s32 0, %v326
  %v328 = vrot.slane %v323, %v327
  %330 = vmatprep.subr.mxu0 0.0
  %331 = vmatpush1.msra.mxu0 %v307
  %332 = vmatprep.subr.mxu0 0.0
  %333 = vmatpush1.msra.mxu0 %v308
  %334 = vmatprep.subr.mxu0 0.0
  %335 = vmatpush1.msra.mxu0 %v309
  %336 = vmatprep.subr.mxu0 0.0
  %337 = vmatpush1.msra.mxu0 %v310
  %338 = vmatprep.subr.mxu0 0.0
  %339 = vmatpush1.msra.mxu0 %v311
  %340 = vmatprep.subr.mxu0 0.0
  %341 = vmatpush1.msra.mxu0 %v312
  %342 = vmatprep.subr.mxu0 0.0
  %343 = vmatpush1.msra.mxu0 %v313
  %344 = vmatprep.subr.mxu0 0.0
  %345 = vmatpush1.msra.mxu0 %v314
  %346 = vmatprep.subr.mxu0 0.0
  %347 = vmatpush1.msra.mxu0 %v315
  %348 = vmatprep.subr.mxu0 0.0
  %349 = vmatpush1.msra.mxu0 %v316
  %350 = vmatprep.subr.mxu0 0.0
  %351 = vmatpush1.msra.mxu0 %v317
  %352 = vmatprep.subr.mxu0 0.0
  %353 = vmatpush1.msra.mxu0 %v318
  %354 = vmatprep.subr.mxu0 0.0
  %355 = vmatpush1.msra.mxu0 %v319
  %356 = vmatprep.subr.mxu0 0.0
  %357 = vmatpush1.msra.mxu0 %v320
  %358 = vmatprep.subr.mxu0 0.0
  %359 = vmatpush1.msra.mxu0 %v321
  %360 = vmatprep.subr.mxu0 0.0
  %361 = vmatpush1.msra.mxu0 %v322
  %362 = vmatprep.subr.mxu0 0.0
  %363 = vmatpush1.msra.mxu0 0.0
  %364 = vmatprep.subr.mxu0 0.0
  %365 = vmatpush1.msra.mxu0 0.0
  %366 = vmatprep.subr.mxu0 0.0
  %367 = vmatpush1.msra.mxu0 0.0
  %368 = vmatprep.subr.mxu0 0.0
  %369 = vmatpush1.msra.mxu0 0.0
  %370 = vmatprep.subr.mxu0 0.0
  %371 = vmatpush1.msra.mxu0 0.0
  %372 = vmatprep.subr.mxu0 0.0
  %373 = vmatpush1.msra.mxu0 0.0
  %374 = vmatprep.subr.mxu0 0.0
  %375 = vmatpush1.msra.mxu0 0.0
  %376 = vmatprep.subr.mxu0 0.0
  %377 = vmatpush1.msra.mxu0 0.0
  %378 = vmatprep.subr.mxu0 0.0
  %379 = vmatpush1.msra.mxu0 0.0
  %380 = vmatprep.subr.mxu0 0.0
  %381 = vmatpush1.msra.mxu0 0.0
  %382 = vmatprep.subr.mxu0 0.0
  %383 = vmatpush1.msra.mxu0 0.0
  %384 = vmatprep.subr.mxu0 0.0
  %385 = vmatpush1.msra.mxu0 0.0
  %386 = vmatprep.subr.mxu0 0.0
  %387 = vmatpush1.msra.mxu0 0.0
  %388 = vmatprep.subr.mxu0 0.0
  %389 = vmatpush1.msra.mxu0 0.0
  %390 = vmatprep.subr.mxu0 0.0
  %391 = vmatpush1.msra.mxu0 0.0
  %392 = vmatprep.subr.mxu0 0.0
  %393 = vmatpush1.msra.mxu0 0.0
  %394 = vmatprep.mubr.f32.mxu0 0.0
  %395 = vmatmul.mubr.f32.gmra.mrb[0].mxu0 %v304
  %v396 = vpop.f32.mrb[0].mxu0
  %v397 = vadd.f32 %v328, %v396
  %v398 = vpop.f32.mrb[0].mxu0
  %399 = vdwg.mxu0
  %vm400 = vcmask 336896
  %401 = vst.msk [vmem:[%s8] sm:$0x3] %vm400, %v397
  %v402 = vld [vmem:[%s3] sm:$0xff]
  %v403 = vld [vmem:[%s3 + $0x8] sm:$0xff]
  %v404 = vld [vmem:[%s3 + $0x10] sm:$0xff]
  %v405 = vld [vmem:[%s3 + $0x18] sm:$0xff]
  %v406 = vld [vmem:[%s3 + $0x20] sm:$0xff]
  %v407 = vld [vmem:[%s3 + $0x28] sm:$0xff]
  %v408 = vld [vmem:[%s3 + $0x30] sm:$0xff]
  %v409 = vld [vmem:[%s3 + $0x38] sm:$0xff]
  %v410 = vld [vmem:[%s3 + $0x40] sm:$0xff]
  %v411 = vld [vmem:[%s3 + $0x48] sm:$0xff]
  %v412 = vld [vmem:[%s3 + $0x50] sm:$0xff]
  %v413 = vld [vmem:[%s3 + $0x58] sm:$0xff]
  %v414 = vld [vmem:[%s3 + $0x60] sm:$0xff]
  %v415 = vld [vmem:[%s3 + $0x68] sm:$0xff]
  %v416 = vld [vmem:[%s3 + $0x70] sm:$0xff]
  %v417 = vld [vmem:[%s3 + $0x78] sm:$0xff]
  %v418 = vld [vmem:[%s3 + $0x80] sm:$0xff]
  %v419 = vld [vmem:[%s3 + $0x88] sm:$0xff]
  %v420 = vld [vmem:[%s3 + $0x90] sm:$0xff]
  %v421 = vld [vmem:[%s3 + $0x98] sm:$0xff]
  %v422 = vld [vmem:[%s3 + $0xa0] sm:$0xff]
  %v423 = vld [vmem:[%s3 + $0xa8] sm:$0xff]
  %v424 = vld [vmem:[%s3 + $0xb0] sm:$0xff]
  %v425 = vld [vmem:[%s3 + $0xb8] sm:$0xff]
  %v426 = vld [vmem:[%s3 + $0xc0] sm:$0xff]
  %v427 = vld [vmem:[%s3 + $0xc8] sm:$0xff]
  %v428 = vld [vmem:[%s3 + $0xd0] sm:$0xff]
  %v429 = vld [vmem:[%s3 + $0xd8] sm:$0xff]
  %v430 = vld [vmem:[%s3 + $0xe0] sm:$0xff]
  %v431 = vld [vmem:[%s3 + $0xe8] sm:$0xff]
  %v432 = vld [vmem:[%s3 + $0xf0] sm:$0xff]
  %v433 = vld [vmem:[%s3 + $0xf8] sm:$0xff]
  %v434 = vld [vmem:[%s3 + $0x100] sm:$0xff]
  %v435 = vld [vmem:[%s3 + $0x108] sm:$0xff]
  %v436 = vld [vmem:[%s3 + $0x110] sm:$0xff]
  %v437 = vld [vmem:[%s3 + $0x118] sm:$0xff]
  %v438 = vld [vmem:[%s3 + $0x120] sm:$0xff]
  %v439 = vld [vmem:[%s3 + $0x128] sm:$0xff]
  %v440 = vld [vmem:[%s3 + $0x130] sm:$0xff]
  %v441 = vld [vmem:[%s3 + $0x138] sm:$0xff]
  %v442 = vld [vmem:[%s3 + $0x140] sm:$0xff]
  %v443 = vld [vmem:[%s3 + $0x148] sm:$0xff]
  %v444 = vld [vmem:[%s3 + $0x150] sm:$0xff]
  %v445 = vld [vmem:[%s3 + $0x158] sm:$0xff]
  %v446 = vld [vmem:[%s3 + $0x160] sm:$0xff]
  %v447 = vld [vmem:[%s3 + $0x168] sm:$0xff]
  %v448 = vld [vmem:[%s3 + $0x170] sm:$0xff]
  %v449 = vld [vmem:[%s3 + $0x178] sm:$0xff]
  %v450 = vld [vmem:[%s4] ss:$4 sm:$0x7]
  %v452 = vlaneseq
  %v453 = vshrl.u32 %v452, 7
  %v454 = vsub.s32 0, %v453
  %v455 = vrot.slane %v450, %v454
  %v456 = vlaneseq
  %v457 = vshrl.u32 %v456, 7
  %v458 = vsub.s32 1, %v457
  %v459 = vrot.slane %v450, %v458
  %v460 = vlaneseq
  %v461 = vshrl.u32 %v460, 7
  %v462 = vsub.s32 2, %v461
  %v463 = vrot.slane %v450, %v462
  %467 = vmatprep.subr.mxu0 %v403
  %468 = vmatpush1.msra.mxu0 %v402
  %469 = vmatprep.subr.mxu0 %v406
  %470 = vmatpush1.msra.mxu0 %v405
  %471 = vmatprep.subr.mxu0 %v409
  %472 = vmatpush1.msra.mxu0 %v408
  %473 = vmatprep.subr.mxu0 %v412
  %474 = vmatpush1.msra.mxu0 %v411
  %475 = vmatprep.subr.mxu0 %v415
  %476 = vmatpush1.msra.mxu0 %v414
  %477 = vmatprep.subr.mxu0 %v418
  %478 = vmatpush1.msra.mxu0 %v417
  %479 = vmatprep.subr.mxu0 %v421
  %480 = vmatpush1.msra.mxu0 %v420
  %481 = vmatprep.subr.mxu0 %v424
  %482 = vmatpush1.msra.mxu0 %v423
  %483 = vmatprep.subr.mxu0 %v427
  %484 = vmatpush1.msra.mxu0 %v426
  %485 = vmatprep.subr.mxu0 %v430
  %486 = vmatpush1.msra.mxu0 %v429
  %487 = vmatprep.subr.mxu0 %v433
  %488 = vmatpush1.msra.mxu0 %v432
  %489 = vmatprep.subr.mxu0 %v436
  %490 = vmatpush1.msra.mxu0 %v435
  %491 = vmatprep.subr.mxu0 %v439
  %492 = vmatpush1.msra.mxu0 %v438
  %493 = vmatprep.subr.mxu0 %v442
  %494 = vmatpush1.msra.mxu0 %v441
  %495 = vmatprep.subr.mxu0 %v445
  %496 = vmatpush1.msra.mxu0 %v444
  %497 = vmatprep.subr.mxu0 %v448
  %498 = vmatpush1.msra.mxu0 %v447
  %499 = vmatprep.subr.mxu0 0.0
  %500 = vmatpush1.msra.mxu0 0.0
  %501 = vmatprep.subr.mxu0 0.0
  %502 = vmatpush1.msra.mxu0 0.0
  %503 = vmatprep.subr.mxu0 0.0
  %504 = vmatpush1.msra.mxu0 0.0
  %505 = vmatprep.subr.mxu0 0.0
  %506 = vmatpush1.msra.mxu0 0.0
  %507 = vmatprep.subr.mxu0 0.0
  %508 = vmatpush1.msra.mxu0 0.0
  %509 = vmatprep.subr.mxu0 0.0
  %510 = vmatpush1.msra.mxu0 0.0
  %511 = vmatprep.subr.mxu0 0.0
  %512 = vmatpush1.msra.mxu0 0.0
  %513 = vmatprep.subr.mxu0 0.0
  %514 = vmatpush1.msra.mxu0 0.0
  %515 = vmatprep.subr.mxu0 0.0
  %516 = vmatpush1.msra.mxu0 0.0
  %517 = vmatprep.subr.mxu0 0.0
  %518 = vmatpush1.msra.mxu0 0.0
  %519 = vmatprep.subr.mxu0 0.0
  %520 = vmatpush1.msra.mxu0 0.0
  %521 = vmatprep.subr.mxu0 0.0
  %522 = vmatpush1.msra.mxu0 0.0
  %523 = vmatprep.subr.mxu0 0.0
  %524 = vmatpush1.msra.mxu0 0.0
  %525 = vmatprep.subr.mxu0 0.0
  %526 = vmatpush1.msra.mxu0 0.0
  %527 = vmatprep.subr.mxu0 0.0
  %528 = vmatpush1.msra.mxu0 0.0
  %529 = vmatprep.subr.mxu0 0.0
  %530 = vmatpush1.msra.mxu0 0.0
  %531 = vmatprep.mubr.f32.mxu0 0.0
  %532 = vmatmul.mubr.f32.gmra.mrb[0].mxu0 %v224
  %v533 = vpop.f32.mrb[0].mxu0
  %v534 = vadd.f32 %v455, %v533
  %v535 = vpop.f32.mrb[0].mxu0
  %v536 = vadd.f32 %v459, %v535
  %537 = vmatprep.mubr.f32.mxu0 0.0
  %538 = vmatmul.mubr.f32.gmra.mrb[0].mxu0 %v225
  %v539 = vpop.f32.mrb[0].mxu0
  %v540 = vadd.f32 %v455, %v539
  %v541 = vpop.f32.mrb[0].mxu0
  %v542 = vadd.f32 %v459, %v541
  %543 = vmatprep.mubr.f32.mxu0 0.0
  %544 = vmatmul.mubr.f32.gmra.mrb[0].mxu0 %v226
  %v545 = vpop.f32.mrb[0].mxu0
  %v546 = vadd.f32 %v455, %v545
  %v547 = vpop.f32.mrb[0].mxu0
  %v548 = vadd.f32 %v459, %v547
  %549 = vmatprep.mubr.f32.mxu0 0.0
  %550 = vmatmul.mubr.f32.gmra.mrb[0].mxu0 %v227
  %v551 = vpop.f32.mrb[0].mxu0
  %v552 = vadd.f32 %v455, %v551
  %v553 = vpop.f32.mrb[0].mxu0
  %v554 = vadd.f32 %v459, %v553
  %555 = vmatprep.mubr.f32.mxu0 0.0
  %556 = vmatmul.mubr.f32.gmra.mrb[0].mxu0 %v228
  %v557 = vpop.f32.mrb[0].mxu0
  %v558 = vadd.f32 %v455, %v557
  %v559 = vpop.f32.mrb[0].mxu0
  %v560 = vadd.f32 %v459, %v559
  %561 = vmatprep.mubr.f32.mxu0 0.0
  %562 = vmatmul.mubr.f32.gmra.mrb[0].mxu0 %v229
  %v563 = vpop.f32.mrb[0].mxu0
  %v564 = vadd.f32 %v455, %v563
  %v565 = vpop.f32.mrb[0].mxu0
  %v566 = vadd.f32 %v459, %v565
  %567 = vdwg.mxu0
  %568 = vmatprep.subr.mxu0 0.0
  %569 = vmatpush1.msra.mxu0 %v404
  %570 = vmatprep.subr.mxu0 0.0
  %571 = vmatpush1.msra.mxu0 %v407
  %572 = vmatprep.subr.mxu0 0.0
  %573 = vmatpush1.msra.mxu0 %v410
  %574 = vmatprep.subr.mxu0 0.0
  %575 = vmatpush1.msra.mxu0 %v413
  %576 = vmatprep.subr.mxu0 0.0
  %577 = vmatpush1.msra.mxu0 %v416
  %578 = vmatprep.subr.mxu0 0.0
  %579 = vmatpush1.msra.mxu0 %v419
  %580 = vmatprep.subr.mxu0 0.0
  %581 = vmatpush1.msra.mxu0 %v422
  %582 = vmatprep.subr.mxu0 0.0
  %583 = vmatpush1.msra.mxu0 %v425
  %584 = vmatprep.subr.mxu0 0.0
  %585 = vmatpush1.msra.mxu0 %v428
  %586 = vmatprep.subr.mxu0 0.0
  %587 = vmatpush1.msra.mxu0 %v431
  %588 = vmatprep.subr.mxu0 0.0
  %589 = vmatpush1.msra.mxu0 %v434
  %590 = vmatprep.subr.mxu0 0.0
  %591 = vmatpush1.msra.mxu0 %v437
  %592 = vmatprep.subr.mxu0 0.0
  %593 = vmatpush1.msra.mxu0 %v440
  %594 = vmatprep.subr.mxu0 0.0
  %595 = vmatpush1.msra.mxu0 %v443
  %596 = vmatprep.subr.mxu0 0.0
  %597 = vmatpush1.msra.mxu0 %v446
  %598 = vmatprep.subr.mxu0 0.0
  %599 = vmatpush1.msra.mxu0 %v449
  %600 = vmatprep.subr.mxu0 0.0
  %601 = vmatpush1.msra.mxu0 0.0
  %602 = vmatprep.subr.mxu0 0.0
  %603 = vmatpush1.msra.mxu0 0.0
  %604 = vmatprep.subr.mxu0 0.0
  %605 = vmatpush1.msra.mxu0 0.0
  %606 = vmatprep.subr.mxu0 0.0
  %607 = vmatpush1.msra.mxu0 0.0
  %608 = vmatprep.subr.mxu0 0.0
  %609 = vmatpush1.msra.mxu0 0.0
  %610 = vmatprep.subr.mxu0 0.0
  %611 = vmatpush1.msra.mxu0 0.0
  %612 = vmatprep.subr.mxu0 0.0
  %613 = vmatpush1.msra.mxu0 0.0
  %614 = vmatprep.subr.mxu0 0.0
  %615 = vmatpush1.msra.mxu0 0.0
  %616 = vmatprep.subr.mxu0 0.0
  %617 = vmatpush1.msra.mxu0 0.0
  %618 = vmatprep.subr.mxu0 0.0
  %619 = vmatpush1.msra.mxu0 0.0
  %620 = vmatprep.subr.mxu0 0.0
  %621 = vmatpush1.msra.mxu0 0.0
  %622 = vmatprep.subr.mxu0 0.0
  %623 = vmatpush1.msra.mxu0 0.0
  %624 = vmatprep.subr.mxu0 0.0
  %625 = vmatpush1.msra.mxu0 0.0
  %626 = vmatprep.subr.mxu0 0.0
  %627 = vmatpush1.msra.mxu0 0.0
  %628 = vmatprep.subr.mxu0 0.0
  %629 = vmatpush1.msra.mxu0 0.0
  %630 = vmatprep.subr.mxu0 0.0
  %631 = vmatpush1.msra.mxu0 0.0
  %632 = vmatprep.mubr.f32.mxu0 0.0
  %633 = vmatmul.mubr.f32.gmra.mrb[0].mxu0 %v224
  %v634 = vpop.f32.mrb[0].mxu0
  %v635 = vadd.f32 %v463, %v634
  %v636 = vpop.f32.mrb[0].mxu0
  %637 = vmatprep.mubr.f32.mxu0 0.0
  %638 = vmatmul.mubr.f32.gmra.mrb[0].mxu0 %v225
  %v639 = vpop.f32.mrb[0].mxu0
  %v640 = vadd.f32 %v463, %v639
  %v641 = vpop.f32.mrb[0].mxu0
  %642 = vmatprep.mubr.f32.mxu0 0.0
  %643 = vmatmul.mubr.f32.gmra.mrb[0].mxu0 %v226
  %v644 = vpop.f32.mrb[0].mxu0
  %v645 = vadd.f32 %v463, %v644
  %v646 = vpop.f32.mrb[0].mxu0
  %647 = vmatprep.mubr.f32.mxu0 0.0
  %648 = vmatmul.mubr.f32.gmra.mrb[0].mxu0 %v227
  %v649 = vpop.f32.mrb[0].mxu0
  %v650 = vadd.f32 %v463, %v649
  %v651 = vpop.f32.mrb[0].mxu0
  %652 = vmatprep.mubr.f32.mxu0 0.0
  %653 = vmatmul.mubr.f32.gmra.mrb[0].mxu0 %v228
  %v654 = vpop.f32.mrb[0].mxu0
  %v655 = vadd.f32 %v463, %v654
  %v656 = vpop.f32.mrb[0].mxu0
  %657 = vmatprep.mubr.f32.mxu0 0.0
  %658 = vmatmul.mubr.f32.gmra.mrb[0].mxu0 %v229
  %v659 = vpop.f32.mrb[0].mxu0
  %v660 = vadd.f32 %v463, %v659
  %v661 = vpop.f32.mrb[0].mxu0
  %662 = vdwg.mxu0
  %v663 = vadd.f32 %v534, %v540
  %v664 = vadd.f32 %v663, %v546
  %v665 = vadd.f32 %v664, %v552
  %v666 = vadd.f32 %v665, %v558
  %v667 = vsel %vm158, %v564, 0.0
  %v668 = vadd.f32 %v666, %v667
  %v669 = vrot.slane %v668, 4
  %v670 = vadd.f32 %v668, %v669
  %v671 = vrot.slane %v670, 2
  %v672 = vadd.f32 %v670, %v671
  %v673 = vrot.slane %v672, 1
  %v674 = vadd.f32 %v672, %v673
  %v675 = vadd.f32 %v536, %v542
  %v676 = vadd.f32 %v675, %v548
  %v677 = vadd.f32 %v676, %v554
  %v678 = vadd.f32 %v677, %v560
  %v679 = vsel %vm158, %v566, 0.0
  %v680 = vadd.f32 %v678, %v679
  %v681 = vrot.slane %v680, 4
  %v682 = vadd.f32 %v680, %v681
  %v683 = vrot.slane %v682, 2
  %v684 = vadd.f32 %v682, %v683
  %v685 = vrot.slane %v684, 1
  %v686 = vadd.f32 %v684, %v685
  %v687 = vadd.f32 %v635, %v640
  %v688 = vadd.f32 %v687, %v645
  %v689 = vadd.f32 %v688, %v650
  %v690 = vadd.f32 %v689, %v655
  %v691 = vsel %vm158, %v660, 0.0
  %v692 = vadd.f32 %v690, %v691
  %v693 = vrot.slane %v692, 4
  %v694 = vadd.f32 %v692, %v693
  %v695 = vrot.slane %v694, 2
  %v696 = vadd.f32 %v694, %v695
  %v697 = vrot.slane %v696, 1
  %v698 = vadd.f32 %v696, %v697
  %v699 = vmul.f32 %v674, %v167
  %v700 = vmul.f32 %v686, %v167
  %v701 = vmul.f32 %v698, %v167
  %v702 = vsub.f32 %v534, %v699
  %v703 = vsub.f32 %v536, %v700
  %v704 = vsub.f32 %v635, %v701
  %v705 = vsub.f32 %v540, %v699
  %v706 = vsub.f32 %v542, %v700
  %v707 = vsub.f32 %v640, %v701
  %v708 = vsub.f32 %v546, %v699
  %v709 = vsub.f32 %v548, %v700
  %v710 = vsub.f32 %v645, %v701
  %v711 = vsub.f32 %v552, %v699
  %v712 = vsub.f32 %v554, %v700
  %v713 = vsub.f32 %v650, %v701
  %v714 = vsub.f32 %v558, %v699
  %v715 = vsub.f32 %v560, %v700
  %v716 = vsub.f32 %v655, %v701
  %v717 = vsub.f32 %v564, %v699
  %v718 = vsub.f32 %v566, %v700
  %v719 = vsub.f32 %v660, %v701
  %v720 = vmul.f32 %v702, %v702
  %v721 = vmul.f32 %v703, %v703
  %v722 = vmul.f32 %v704, %v704
  %v723 = vmul.f32 %v705, %v705
  %v724 = vmul.f32 %v706, %v706
  %v725 = vmul.f32 %v707, %v707
  %v726 = vmul.f32 %v708, %v708
  %v727 = vmul.f32 %v709, %v709
  %v728 = vmul.f32 %v710, %v710
  %v729 = vmul.f32 %v711, %v711
  %v730 = vmul.f32 %v712, %v712
  %v731 = vmul.f32 %v713, %v713
  %v732 = vmul.f32 %v714, %v714
  %v733 = vmul.f32 %v715, %v715
  %v734 = vmul.f32 %v716, %v716
  %v735 = vmul.f32 %v717, %v717
  %v736 = vmul.f32 %v718, %v718
  %v737 = vmul.f32 %v719, %v719
  %v738 = vadd.f32 %v720, %v723
  %v739 = vadd.f32 %v738, %v726
  %v740 = vadd.f32 %v739, %v729
  %v741 = vadd.f32 %v740, %v732
  %v742 = vsel %vm158, %v735, 0.0
  %v743 = vadd.f32 %v741, %v742
  %v744 = vrot.slane %v743, 4
  %v745 = vadd.f32 %v743, %v744
  %v746 = vrot.slane %v745, 2
  %v747 = vadd.f32 %v745, %v746
  %v748 = vrot.slane %v747, 1
  %v749 = vadd.f32 %v747, %v748
  %v750 = vadd.f32 %v721, %v724
  %v751 = vadd.f32 %v750, %v727
  %v752 = vadd.f32 %v751, %v730
  %v753 = vadd.f32 %v752, %v733
  %v754 = vsel %vm158, %v736, 0.0
  %v755 = vadd.f32 %v753, %v754
  %v756 = vrot.slane %v755, 4
  %v757 = vadd.f32 %v755, %v756
  %v758 = vrot.slane %v757, 2
  %v759 = vadd.f32 %v757, %v758
  %v760 = vrot.slane %v759, 1
  %v761 = vadd.f32 %v759, %v760
  %v762 = vadd.f32 %v722, %v725
  %v763 = vadd.f32 %v762, %v728
  %v764 = vadd.f32 %v763, %v731
  %v765 = vadd.f32 %v764, %v734
  %v766 = vsel %vm158, %v737, 0.0
  %v767 = vadd.f32 %v765, %v766
  %v768 = vrot.slane %v767, 4
  %v769 = vadd.f32 %v767, %v768
  %v770 = vrot.slane %v769, 2
  %v771 = vadd.f32 %v769, %v770
  %v772 = vrot.slane %v771, 1
  %v773 = vadd.f32 %v771, %v772
  %v774 = vmul.f32 %v749, %v167
  %v775 = vmul.f32 %v761, %v167
  %v776 = vmul.f32 %v773, %v167
  %v777 = vadd.f32 %v774, 1e-05
  %v778 = vadd.f32 %v775, 1e-05
  %v779 = vadd.f32 %v776, 1e-05
  %v780 = vrsqrt.pop %v777
  %v781 = vrsqrt.pop %v778
  %v782 = vrsqrt.pop %v779
  %v783 = vmul.f32 %v702, %v780
  %v784 = vmul.f32 %v703, %v781
  %v785 = vmul.f32 %v704, %v782
  %v786 = vmul.f32 %v705, %v780
  %v787 = vmul.f32 %v706, %v781
  %v788 = vmul.f32 %v707, %v782
  %v789 = vmul.f32 %v708, %v780
  %v790 = vmul.f32 %v709, %v781
  %v791 = vmul.f32 %v710, %v782
  %v792 = vmul.f32 %v711, %v780
  %v793 = vmul.f32 %v712, %v781
  %v794 = vmul.f32 %v713, %v782
  %v795 = vmul.f32 %v714, %v780
  %v796 = vmul.f32 %v715, %v781
  %v797 = vmul.f32 %v716, %v782
  %v798 = vmul.f32 %v717, %v780
  %v799 = vmul.f32 %v718, %v781
  %v800 = vmul.f32 %v719, %v782
  %s801 = scalar_lea.vmem %s4, 1
  %v802 = vld [vmem:[%s801] ss:$4 sm:$0x7]
  %v804 = vlaneseq
  %v805 = vshrl.u32 %v804, 7
  %v806 = vsub.s32 0, %v805
  %v807 = vrot.slane %v802, %v806
  %v808 = vlaneseq
  %v809 = vshrl.u32 %v808, 7
  %v810 = vsub.s32 1, %v809
  %v811 = vrot.slane %v802, %v810
  %v812 = vlaneseq
  %v813 = vshrl.u32 %v812, 7
  %v814 = vsub.s32 2, %v813
  %v815 = vrot.slane %v802, %v814
  %v819 = vmul.f32 %v783, %v807
  %v820 = vmul.f32 %v784, %v811
  %v821 = vmul.f32 %v785, %v815
  %v822 = vmul.f32 %v786, %v807
  %v823 = vmul.f32 %v787, %v811
  %v824 = vmul.f32 %v788, %v815
  %v825 = vmul.f32 %v789, %v807
  %v826 = vmul.f32 %v790, %v811
  %v827 = vmul.f32 %v791, %v815
  %v828 = vmul.f32 %v792, %v807
  %v829 = vmul.f32 %v793, %v811
  %v830 = vmul.f32 %v794, %v815
  %v831 = vmul.f32 %v795, %v807
  %v832 = vmul.f32 %v796, %v811
  %v833 = vmul.f32 %v797, %v815
  %v834 = vmul.f32 %v798, %v807
  %v835 = vmul.f32 %v799, %v811
  %v836 = vmul.f32 %v800, %v815
  %s837 = scalar_lea.vmem %s4, 2
  %v838 = vld [vmem:[%s837] ss:$4 sm:$0x7]
  %v840 = vlaneseq
  %v841 = vshrl.u32 %v840, 7
  %v842 = vsub.s32 0, %v841
  %v843 = vrot.slane %v838, %v842
  %v844 = vlaneseq
  %v845 = vshrl.u32 %v844, 7
  %v846 = vsub.s32 1, %v845
  %v847 = vrot.slane %v838, %v846
  %v848 = vlaneseq
  %v849 = vshrl.u32 %v848, 7
  %v850 = vsub.s32 2, %v849
  %v851 = vrot.slane %v838, %v850
  %v855 = vadd.f32 %v819, %v843
  %v856 = vadd.f32 %v820, %v847
  %v857 = vadd.f32 %v821, %v851
  %v858 = vadd.f32 %v822, %v843
  %v859 = vadd.f32 %v823, %v847
  %v860 = vadd.f32 %v824, %v851
  %v861 = vadd.f32 %v825, %v843
  %v862 = vadd.f32 %v826, %v847
  %v863 = vadd.f32 %v827, %v851
  %v864 = vadd.f32 %v828, %v843
  %v865 = vadd.f32 %v829, %v847
  %v866 = vadd.f32 %v830, %v851
  %v867 = vadd.f32 %v831, %v843
  %v868 = vadd.f32 %v832, %v847
  %v869 = vadd.f32 %v833, %v851
  %v870 = vadd.f32 %v834, %v843
  %v871 = vadd.f32 %v835, %v847
  %v872 = vadd.f32 %v836, %v851
  %v873 = vmax.f32 %v855, 0.0
  %v874 = vmax.f32 %v856, 0.0
  %v875 = vmax.f32 %v857, 0.0
  %v876 = vmax.f32 %v858, 0.0
  %v877 = vmax.f32 %v859, 0.0
  %v878 = vmax.f32 %v860, 0.0
  %v879 = vmax.f32 %v861, 0.0
  %v880 = vmax.f32 %v862, 0.0
  %v881 = vmax.f32 %v863, 0.0
  %v882 = vmax.f32 %v864, 0.0
  %v883 = vmax.f32 %v865, 0.0
  %v884 = vmax.f32 %v866, 0.0
  %v885 = vmax.f32 %v867, 0.0
  %v886 = vmax.f32 %v868, 0.0
  %v887 = vmax.f32 %v869, 0.0
  %v888 = vmax.f32 %v870, 0.0
  %v889 = vmax.f32 %v871, 0.0
  %v890 = vmax.f32 %v872, 0.0
  %v892 = vsel %vm158, %v888, 0
  %v895 = vsel %vm158, %v889, 0
  %v898 = vsel %vm158, %v890, 0
  %900 = vmatprep.subr.mxu0 %v874
  %901 = vmatpush1.msra.mxu0 %v873
  %902 = vmatprep.subr.mxu0 %v877
  %903 = vmatpush1.msra.mxu0 %v876
  %904 = vmatprep.subr.mxu0 %v880
  %905 = vmatpush1.msra.mxu0 %v879
  %906 = vmatprep.subr.mxu0 %v883
  %907 = vmatpush1.msra.mxu0 %v882
  %908 = vmatprep.subr.mxu0 %v886
  %909 = vmatpush1.msra.mxu0 %v885
  %910 = vmatprep.subr.mxu0 %v895
  %911 = vmatpush1.msra.mxu0 %v892
  %912 = vmatprep.subr.mxu0 0.0
  %913 = vmatpush1.msra.mxu0 0.0
  %914 = vmatprep.subr.mxu0 0.0
  %915 = vmatpush1.msra.mxu0 0.0
  %916 = vmatprep.subr.mxu0 0.0
  %917 = vmatpush1.msra.mxu0 0.0
  %918 = vmatprep.subr.mxu0 0.0
  %919 = vmatpush1.msra.mxu0 0.0
  %920 = vmatprep.subr.mxu0 0.0
  %921 = vmatpush1.msra.mxu0 0.0
  %922 = vmatprep.subr.mxu0 0.0
  %923 = vmatpush1.msra.mxu0 0.0
  %924 = vmatprep.subr.mxu0 0.0
  %925 = vmatpush1.msra.mxu0 0.0
  %926 = vmatprep.subr.mxu0 0.0
  %927 = vmatpush1.msra.mxu0 0.0
  %928 = vmatprep.subr.mxu0 0.0
  %929 = vmatpush1.msra.mxu0 0.0
  %930 = vmatprep.subr.mxu0 0.0
  %931 = vmatpush1.msra.mxu0 0.0
  %932 = vmatprep.subr.mxu0 0.0
  %933 = vmatpush1.msra.mxu0 0.0
  %934 = vmatprep.subr.mxu0 0.0
  %935 = vmatpush1.msra.mxu0 0.0
  %936 = vmatprep.subr.mxu0 0.0
  %937 = vmatpush1.msra.mxu0 0.0
  %938 = vmatprep.subr.mxu0 0.0
  %939 = vmatpush1.msra.mxu0 0.0
  %940 = vmatprep.subr.mxu0 0.0
  %941 = vmatpush1.msra.mxu0 0.0
  %942 = vmatprep.subr.mxu0 0.0
  %943 = vmatpush1.msra.mxu0 0.0
  %944 = vmatprep.subr.mxu0 0.0
  %945 = vmatpush1.msra.mxu0 0.0
  %946 = vmatprep.subr.mxu0 0.0
  %947 = vmatpush1.msra.mxu0 0.0
  %948 = vmatprep.subr.mxu0 0.0
  %949 = vmatpush1.msra.mxu0 0.0
  %950 = vmatprep.subr.mxu0 0.0
  %951 = vmatpush1.msra.mxu0 0.0
  %952 = vmatprep.subr.mxu0 0.0
  %953 = vmatpush1.msra.mxu0 0.0
  %954 = vmatprep.subr.mxu0 0.0
  %955 = vmatpush1.msra.mxu0 0.0
  %956 = vmatprep.subr.mxu0 0.0
  %957 = vmatpush1.msra.mxu0 0.0
  %958 = vmatprep.subr.mxu0 0.0
  %959 = vmatpush1.msra.mxu0 0.0
  %960 = vmatprep.subr.mxu0 0.0
  %961 = vmatpush1.msra.mxu0 0.0
  %962 = vmatprep.subr.mxu0 0.0
  %963 = vmatpush1.msra.mxu0 0.0
  %964 = vmatprep.mubr.f32.mxu0 0.0
  %965 = vmatmul.mubr.f32.gmra.mrb[0].mxu0 %v232
  %v966 = vpop.f32.mrb[0].mxu0
  %v967 = vadd.f32 0.0, %v966
  %v968 = vpop.f32.mrb[0].mxu0
  %v969 = vadd.f32 0.0, %v968
  %970 = vdwg.mxu0
  %971 = vmatprep.subr.mxu0 0.0
  %972 = vmatpush1.msra.mxu0 %v875
  %973 = vmatprep.subr.mxu0 0.0
  %974 = vmatpush1.msra.mxu0 %v878
  %975 = vmatprep.subr.mxu0 0.0
  %976 = vmatpush1.msra.mxu0 %v881
  %977 = vmatprep.subr.mxu0 0.0
  %978 = vmatpush1.msra.mxu0 %v884
  %979 = vmatprep.subr.mxu0 0.0
  %980 = vmatpush1.msra.mxu0 %v887
  %981 = vmatprep.subr.mxu0 0.0
  %982 = vmatpush1.msra.mxu0 %v898
  %983 = vmatprep.subr.mxu0 0.0
  %984 = vmatpush1.msra.mxu0 0.0
  %985 = vmatprep.subr.mxu0 0.0
  %986 = vmatpush1.msra.mxu0 0.0
  %987 = vmatprep.subr.mxu0 0.0
  %988 = vmatpush1.msra.mxu0 0.0
  %989 = vmatprep.subr.mxu0 0.0
  %990 = vmatpush1.msra.mxu0 0.0
  %991 = vmatprep.subr.mxu0 0.0
  %992 = vmatpush1.msra.mxu0 0.0
  %993 = vmatprep.subr.mxu0 0.0
  %994 = vmatpush1.msra.mxu0 0.0
  %995 = vmatprep.subr.mxu0 0.0
  %996 = vmatpush1.msra.mxu0 0.0
  %997 = vmatprep.subr.mxu0 0.0
  %998 = vmatpush1.msra.mxu0 0.0
  %999 = vmatprep.subr.mxu0 0.0
  %1000 = vmatpush1.msra.mxu0 0.0
  %1001 = vmatprep.subr.mxu0 0.0
  %1002 = vmatpush1.msra.mxu0 0.0
  %1003 = vmatprep.subr.mxu0 0.0
  %1004 = vmatpush1.msra.mxu0 0.0
  %1005 = vmatprep.subr.mxu0 0.0
  %1006 = vmatpush1.msra.mxu0 0.0
  %1007 = vmatprep.subr.mxu0 0.0
  %1008 = vmatpush1.msra.mxu0 0.0
  %1009 = vmatprep.subr.mxu0 0.0
  %1010 = vmatpush1.msra.mxu0 0.0
  %1011 = vmatprep.subr.mxu0 0.0
  %1012 = vmatpush1.msra.mxu0 0.0
  %1013 = vmatprep.subr.mxu0 0.0
  %1014 = vmatpush1.msra.mxu0 0.0
  %1015 = vmatprep.subr.mxu0 0.0
  %1016 = vmatpush1.msra.mxu0 0.0
  %1017 = vmatprep.subr.mxu0 0.0
  %1018 = vmatpush1.msra.mxu0 0.0
  %1019 = vmatprep.subr.mxu0 0.0
  %1020 = vmatpush1.msra.mxu0 0.0
  %1021 = vmatprep.subr.mxu0 0.0
  %1022 = vmatpush1.msra.mxu0 0.0
  %1023 = vmatprep.subr.mxu0 0.0
  %1024 = vmatpush1.msra.mxu0 0.0
  %1025 = vmatprep.subr.mxu0 0.0
  %1026 = vmatpush1.msra.mxu0 0.0
  %1027 = vmatprep.subr.mxu0 0.0
  %1028 = vmatpush1.msra.mxu0 0.0
  %1029 = vmatprep.subr.mxu0 0.0
  %1030 = vmatpush1.msra.mxu0 0.0
  %1031 = vmatprep.subr.mxu0 0.0
  %1032 = vmatpush1.msra.mxu0 0.0
  %1033 = vmatprep.subr.mxu0 0.0
  %1034 = vmatpush1.msra.mxu0 0.0
  %1035 = vmatprep.mubr.f32.mxu0 0.0
  %1036 = vmatmul.mubr.f32.gmra.mrb[0].mxu0 %v232
  %v1037 = vpop.f32.mrb[0].mxu0
  %v1038 = vadd.f32 0.0, %v1037
  %v1039 = vpop.f32.mrb[0].mxu0
  %1040 = vdwg.mxu0
  %v1044 = vcombine.low %v967, %v969
  %v1046 = vunpack.c.l.s4 1983009808
  %v1047 = vunpack.c.0.s8 %v1046
  %v1048 = vlaneseq
  %v1049 = vshrl.u32 %v1048, 7
  %v1050 = vsub.s32 %v1047, %v1049
  %v1051 = vrot.slane %v1044, %v1050
  %v1053 = vunpack.c.l.s4 1983009808
  %v1054 = vunpack.c.0.s8 %v1053
  %v1055 = vlaneseq
  %v1056 = vshrl.u32 %v1055, 7
  %v1057 = vsub.s32 %v1054, %v1056
  %v1058 = vrot.slane %v1038, %v1057
  %v1059 = vcombine.low %v1051, %v1058
  %1061 = vst [vmem:[%s9] sm:$0x3f] %v1059
  // Predicated region
  $region34: #{local_relationship_forward.1} parent=0 // pred_check
    _
  $region35: #{local_relationship_forward.1} parent=0 // pred_check_branch
    %1063 = sbr.rel (0) target = $region37
  $region36: #{local_relationship_forward.1} parent=0 // pred_region
    _
  $region37: #{local_relationship_forward.1} parent=0 // pred_fallthru
    _
  // Predicated region
  $region38: #{local_relationship_forward.1} parent=0 // pred_check
    _
  $region39: #{local_relationship_forward.1} parent=0 // pred_check_branch
    %1065 = sbr.rel (0) target = $region41
  $region40: #{local_relationship_forward.1} parent=0 // pred_region
    _
  $region41: #{local_relationship_forward.1} parent=0 // pred_fallthru
    _
  // Predicated region
  $region42: #{local_relationship_forward.1} parent=0 // pred_check
    _
  $region43: #{local_relationship_forward.1} parent=0 // pred_check_branch
    %1067 = sbr.rel (0) target = $region45
  $region44: #{local_relationship_forward.1} parent=0 // pred_region
    _
  $region45: #{local_relationship_forward.1} parent=0 // pred_fallthru
    _
  // Predicated region
  $region46: #{local_relationship_forward.1} parent=0 // pred_check
    _
  $region47: #{local_relationship_forward.1} parent=0 // pred_check_branch
    %1069 = sbr.rel (0) target = $region49
  $region48: #{local_relationship_forward.1} parent=0 // pred_region
    _
  $region49: #{local_relationship_forward.1} parent=0 // pred_fallthru
    _

</llo_original>
